<compile_context>
chip_gen: v7x
topology: tpu7x:2x2x1
jax: 0.10.0
libtpu: 0.0.40
codegen_flags: <defaults>
</compile_context>

<pallas_src>
import functools

import jax
import jax.numpy as jnp
from jax.experimental import pallas as pl
from jax.experimental.pallas import tpu as pltpu


def _round_up(x, m):
    return ((x + m - 1) // m) * m


def _sublane_multiple(dtype):
    # Native sublane packing: 8 rows for 4-byte, 16 for 2-byte, 32 for 1-byte.
    return {4: 8, 2: 16, 1: 32}.get(jnp.dtype(dtype).itemsize, 8)


def _lora_kernel(x_ref, wd_ref, wu_ref, o_ref, down_ref, *,
                 compute_dtype, cast_input):
    """One (row-tile, out-tile) grid step."""
    j = pl.program_id(1)

    # The down projection only depends on the row tile.  The out axis (j) is
    # the fastest-varying, sequential ("arbitrary") axis, so compute it once
    # per row tile and cache it in VMEM scratch for all later out blocks.
    @pl.when(j == 0)
    def _():
        x = x_ref[...]
        if cast_input:
            x = x.astype(compute_dtype)
        down_ref[...] = jnp.dot(x, wd_ref[...],
                                preferred_element_type=jnp.float32)

    down = down_ref[...]
    if jnp.dtype(compute_dtype) != jnp.dtype(jnp.float32):
        down = down.astype(compute_dtype)
    # Up projection (alpha/rank already folded into wu in the wrapper).
    up = jnp.dot(down, wu_ref[...], preferred_element_type=jnp.float32)
    o_ref[...] = up.astype(o_ref.dtype)


def _vmem_limit_bytes():
    cap = 64 * 1024 * 1024  # conservative default: v7x per-TC VMEM
    try:
        info = pltpu.get_tpu_info()
        c = getattr(info, "vmem_capacity_bytes", None)
        if c:
            cap = int(c)
    except Exception:
        pass
    # Never assume more than one TensorCore's worth of VMEM (64 MiB on v7x);
    # on v5e/v6e (128 MiB) this still leaves plenty of headroom for the tiles
    # this kernel needs.
    return min(int(cap * 3 // 4), 64 * 1024 * 1024)


def _pick_tiles(m, out_pad, in_features, rank, x_bytes, o_bytes, w_bytes,
                cast_input, budget_bytes, sublane):
    """Largest (tm, tn) whose VMEM working set fits the budget.

    Prefers a large row tile first (the kernel is an HBM-bound stream), then
    the largest lane-dense out tile -- tn == out_pad when it fits, which makes
    the up weight grid-invariant and gives a single out block on single-TC
    chips (v5e / v6e)."""
    rank_pad = _round_up(rank, 128)

    def fits(tm, tn):
        b = 2 * tm * in_features * x_bytes                  # x tile, double-buffered
        if cast_input:
            b += tm * in_features * w_bytes                 # cast temporary
        b += tm * rank_pad * 4                              # down scratch (f32, lane-padded)
        b += 2 * tm * tn * o_bytes                          # out tile, double-buffered
        b += tm * tn * 4                                    # f32 accumulator temp
        b += 2 * (in_features * rank_pad + rank_pad * tn) * w_bytes   # weights
        return b <= budget_bytes

    tn_cands = [out_pad] + [t for t in (4096, 2048, 1024, 512, 256, 128)
                            if t < out_pad and out_pad % t == 0]
    tm_cands = [t for t in (1024, 512, 256, 128, 64, 32, 16, 8) if t >= sublane]

    for tm in tm_cands:
        for tn in tn_cands:
            if fits(tm, tn):
                # Don't tile more rows than we actually have.
                return min(tm, _round_up(max(m, 1), sublane)), tn
    return sublane, min(128, out_pad)


def lora_linear(hidden_states, down_weight, up_weight, network_alpha=None):
    """LoRA linear forward (matches LoRALinearLayer.forward).

    hidden_states: (..., in_features), any float dtype (preserved on output).
    down_weight:   (rank, in_features)   -- nn.Linear(in_features, rank).weight
    up_weight:     (out_features, rank)  -- nn.Linear(rank, out_features).weight
    """
    orig_dtype = hidden_states.dtype
    compute_dtype = down_weight.dtype
    rank, in_features = down_weight.shape
    out_features, _ = up_weight.shape

    lead_shape = hidden_states.shape[:-1]
    M = 1
    for d in lead_shape:
        M *= d
    x2d = hidden_states.reshape(M, in_features)

    # Fold the LoRA scale into the tiny up weight once and pre-transpose so the
    # hot path is two plain MXU matmuls.
    # TODO(synk): in production pass pre-transposed / pre-scaled weights to
    # avoid this per-call transpose HBM round-trip (glue, not the hot path).
    scale = 1.0 if network_alpha is None else float(network_alpha) / float(rank)
    wd_t = down_weight.T                                     # (in, rank)
    wu_t = up_weight.T                                       # (rank, out)
    if scale != 1.0:
        wu_t = (wu_t.astype(jnp.float32) * scale).astype(compute_dtype)

    # Pad out_features to a lane-dense multiple of 128 (unmasked stores);
    # the padded columns are sliced off after the call.
    out_pad = _round_up(out_features, 128)
    if out_pad != out_features:
        wu_t = jnp.pad(wu_t, ((0, 0), (0, out_pad - out_features)))

    # ---- tile selection ------------------------------------------------------
    x_bytes = jnp.dtype(orig_dtype).itemsize
    w_bytes = jnp.dtype(compute_dtype).itemsize
    o_bytes = x_bytes
    cast_input = jnp.dtype(orig_dtype) != jnp.dtype(compute_dtype)
    sublane = max(_sublane_multiple(orig_dtype), _sublane_multiple(compute_dtype))

    vmem_limit = _vmem_limit_bytes()
    tm, tn = _pick_tiles(M, out_pad, in_features, rank, x_bytes, o_bytes,
                         w_bytes, cast_input,
                         budget_bytes=int(vmem_limit * 0.7), sublane=sublane)

    # Pad rows so the grid covers M with whole tiles (no divisibility assert).
    m_pad = _round_up(max(M, sublane), tm)
    if m_pad != M:
        x2d = jnp.pad(x2d, ((0, m_pad - M), (0, 0)))

    grid = (m_pad // tm, out_pad // tn)

    kernel = functools.partial(_lora_kernel, compute_dtype=compute_dtype,
                               cast_input=cast_input)

    cost = pl.CostEstimate(
        flops=2 * M * rank * (in_features + out_features),
        transcendentals=0,
        bytes_accessed=(M * in_features * x_bytes
                        + (in_features * rank + rank * out_features) * w_bytes
                        + M * out_features * o_bytes),
    )

    out2d = pl.pallas_call(
        kernel,
        out_shape=jax.ShapeDtypeStruct((m_pad, out_pad), orig_dtype),
        grid_spec=pltpu.PrefetchScalarGridSpec(
            num_scalar_prefetch=0,
            grid=grid,
            in_specs=[
                # x block index is constant along the (fastest) out axis ->
                # not re-DMA'd per out block.
                pl.BlockSpec((tm, in_features), lambda i, j: (i, 0)),
                # grid-invariant down weight: fetched once.
                pl.BlockSpec((in_features, rank), lambda i, j: (0, 0)),
                # up weight sliced along out_features only (tiny: rank x tn);
                # grid-invariant when tn == out_pad (the common case).
                pl.BlockSpec((rank, tn), lambda i, j: (0, j)),
            ],
            out_specs=pl.BlockSpec((tm, tn), lambda i, j: (i, j)),
            # Per-row-tile down-projection cache (f32).
            scratch_shapes=[pltpu.VMEM((tm, rank), jnp.float32)],
        ),
        compiler_params=pltpu.CompilerParams(
            # Rows megacore-sharded (disjoint x reads per core on v7x); the
            # out axis must be sequential for the down-projection cache.
            dimension_semantics=("parallel", "arbitrary"),
            vmem_limit_bytes=vmem_limit,
        ),
        cost_estimate=cost,
    )(x2d, wd_t, wu_t)

    if m_pad != M:
        out2d = out2d[:M]
    if out_pad != out_features:
        out2d = out2d[:, :out_features]
    return out2d.reshape(*lead_shape, out_features)


if __name__ == "__main__":
    # Small shapes consistent with the module's forward.
    batch, seq = 2, 8
    in_features, out_features, rank = 32, 64, 4
    network_alpha = 8.0

    key = jax.random.PRNGKey(0)
    k_x, k_down, k_up = jax.random.split(key, 3)

    # Module init: down.weight ~ N(0, 1/rank), up.weight = zeros.
    down_weight = (jax.random.normal(k_down, (rank, in_features), jnp.float32)
                   * (1.0 / rank))
    up_weight_init = jnp.zeros((out_features, rank), jnp.float32)
    # Also test a non-zero ("trained") up weight so the check is not trivially 0.
    up_weight_trained = jax.random.normal(k_up, (out_features, rank), jnp.float32)

    hidden_states = jax.random.normal(k_x, (batch, seq, in_features), jnp.float32)

    def ref_fn(x, wd, wu, alpha):
        r = wd.shape[0]
        y = (x.astype(wd.dtype) @ wd.T) @ wu.T
        if alpha is not None:
            y = y * (alpha / r)
        return y.astype(x.dtype)

    # 1) f32 path (zero-init and trained up weights).
    for wu in (up_weight_init, up_weight_trained):
        out = lora_linear(hidden_states, down_weight, wu,
                          network_alpha=network_alpha)
        out = jax.block_until_ready(out)
        ref = ref_fn(hidden_states, down_weight, wu, network_alpha)
        assert out.shape == (batch, seq, out_features)
        assert out.dtype == hidden_states.dtype
        assert jnp.allclose(out, ref, atol=1e-5, rtol=1e-5), \
            float(jnp.max(jnp.abs(out - ref)))

    # 2) Row-padding path: leading dims whose product is not a tile multiple.
    x_odd = jax.random.normal(k_x, (3, 5, in_features), jnp.float32)
    out = jax.block_until_ready(
        lora_linear(x_odd, down_weight, up_weight_trained,
                    network_alpha=network_alpha))
    ref = ref_fn(x_odd, down_weight, up_weight_trained, network_alpha)
    assert out.shape == (3, 5, out_features)
    assert jnp.allclose(out, ref, atol=1e-5, rtol=1e-5), \
        float(jnp.max(jnp.abs(out - ref)))

    # 3) bf16 smoke test (no-cast path, 16-row sublane padding); loose tolerance
    #    because alpha/rank is folded into the bf16 up weight pre-matmul.
    hs_bf = hidden_states.astype(jnp.bfloat16)
    dw_bf = down_weight.astype(jnp.bfloat16)
    uw_bf = up_weight_trained.astype(jnp.bfloat16)
    out_bf = jax.block_until_ready(
        lora_linear(hs_bf, dw_bf, uw_bf, network_alpha=network_alpha))
    ref_f32 = ref_fn(hidden_states, down_weight, up_weight_trained,
                     network_alpha)
    assert out_bf.shape == (batch, seq, out_features)
    assert out_bf.dtype == jnp.bfloat16
    assert jnp.allclose(out_bf.astype(jnp.float32), ref_f32,
                        atol=0.3, rtol=0.05), \
        float(jnp.max(jnp.abs(out_bf.astype(jnp.float32) - ref_f32)))

    print("KERNEL_OK")
</pallas_src>

<mosaic_0001>
module attributes {stable_mosaic.version = 11 : i64} {
  func.func @_lora_kernel(%arg0: i32, %arg1: i32, %arg2: memref<16x32xf32, #tpu.memory_space<vmem>>, %arg3: memref<32x4xf32, #tpu.memory_space<vmem>>, %arg4: memref<4x128xf32, #tpu.memory_space<vmem>>, %arg5: memref<16x128xf32, #tpu.memory_space<vmem>>, %arg6: memref<16x4xf32, #tpu.memory_space<vmem>>) attributes {dimension_semantics = [#tpu.dimension_semantics<parallel>, #tpu.dimension_semantics<arbitrary>], iteration_bounds = array<i64: 1, 1>, scalar_prefetch = 0 : i64, scratch_operands = 1 : i64, tpu.core_type = #tpu.core_type<tc>, window_params = [{transform_indices = @transform_0, window_bounds = array<i64: 16, 32>}, {pipeline_mode = #tpu.pipeline_mode<synchronous>, transform_indices = @transform_1, window_bounds = array<i64: 32, 4>}, {transform_indices = @transform_2, window_bounds = array<i64: 4, 128>}, {transform_indices = @transform_3, window_bounds = array<i64: 16, 128>}]} {
    %c0_i32 = arith.constant 0 : i32
    %0 = arith.cmpi eq, %arg1, %c0_i32 : i32
    %1 = arith.extui %0 : i1 to i32
    %c0_i32_0 = arith.constant 0 : i32
    %2 = arith.cmpi ne, %1, %c0_i32_0 : i32
    scf.if %2 {
      %c0_6 = arith.constant 0 : index
      %c0_7 = arith.constant 0 : index
      %7 = vector.load %arg2[%c0_6, %c0_7] : memref<16x32xf32, #tpu.memory_space<vmem>>, vector<16x32xf32>
      %c0_8 = arith.constant 0 : index
      %c0_9 = arith.constant 0 : index
      %8 = vector.load %arg3[%c0_8, %c0_9] : memref<32x4xf32, #tpu.memory_space<vmem>>, vector<32x4xf32>
      %cst_10 = arith.constant dense<0.000000e+00> : vector<16x4xf32>
      %9 = tpu.matmul %7, %8, %cst_10 {dimension_numbers = #tpu.dot_dimension_numbers<[1], [0], [0], [1], [0, 0, 1, 1], [], []>} : vector<16x32xf32>, vector<32x4xf32>, vector<16x4xf32> -> vector<16x4xf32>
      %c0_11 = arith.constant 0 : index
      %c0_12 = arith.constant 0 : index
      %10 = vector.load %arg6[%c0_11, %c0_12] : memref<16x4xf32, #tpu.memory_space<vmem>>, vector<16x4xf32>
      tpu.vector_store %arg6[%c0_11, %c0_12], %9 {strides = array<i32>} : memref<16x4xf32, #tpu.memory_space<vmem>>, vector<16x4xf32>,
    } else {
    }
    %c0 = arith.constant 0 : index
    %c0_1 = arith.constant 0 : index
    %3 = vector.load %arg6[%c0, %c0_1] : memref<16x4xf32, #tpu.memory_space<vmem>>, vector<16x4xf32>
    %c0_2 = arith.constant 0 : index
    %c0_3 = arith.constant 0 : index
    %4 = vector.load %arg4[%c0_2, %c0_3] : memref<4x128xf32, #tpu.memory_space<vmem>>, vector<4x128xf32>
    %cst = arith.constant dense<0.000000e+00> : vector<16x128xf32>
    %5 = tpu.matmul %3, %4, %cst {dimension_numbers = #tpu.dot_dimension_numbers<[1], [0], [0], [1], [0, 0, 1, 1], [], []>} : vector<16x4xf32>, vector<4x128xf32>, vector<16x128xf32> -> vector<16x128xf32>
    %c0_4 = arith.constant 0 : index
    %c0_5 = arith.constant 0 : index
    %6 = vector.load %arg5[%c0_4, %c0_5] : memref<16x128xf32, #tpu.memory_space<vmem>>, vector<16x128xf32>
    tpu.vector_store %arg5[%c0_4, %c0_5], %5 {strides = array<i32>} : memref<16x128xf32, #tpu.memory_space<vmem>>, vector<16x128xf32>,
    return
  }
  func.func @transform_0(%arg0: i32, %arg1: i32) -> (i32, i32) {
    %c0_i32 = arith.constant 0 : i32
    %c0_i32_0 = arith.constant 0 : i32
    return %arg0, %c0_i32 : i32, i32
  }
  func.func @transform_1(%arg0: i32, %arg1: i32) -> (i32, i32) {
    %c0_i32 = arith.constant 0 : i32
    %c0_i32_0 = arith.constant 0 : i32
    %c0_i32_1 = arith.constant 0 : i32
    return %c0_i32, %c0_i32_0 : i32, i32
  }
  func.func @transform_2(%arg0: i32, %arg1: i32) -> (i32, i32) {
    %c0_i32 = arith.constant 0 : i32
    %c0_i32_0 = arith.constant 0 : i32
    return %c0_i32, %arg1 : i32, i32
  }
  func.func @transform_3(%arg0: i32, %arg1: i32) -> (i32, i32) {
    %c0_i32 = arith.constant 0 : i32
    return %arg0, %arg1 : i32, i32
  }
}

</mosaic_0001>

<llo_original>
// kernel: tpu_custom_call.1
$region0: #{tpu_custom_call.1}
  #allocation0 [shape = 'u32[]', space=smem, size = 0x4, offset = 0x4, fixed_abs, tag = 'smem constant byte address 0x4 - core index']
  #allocation1 [shape = 'u32[144,128]{1,0:T(1,128)}', space=vmem, size = 0x12000, scoped, tag = 'internal scratch']
  #allocation2 [shape = 'f32[16,4]{1,0:T(8,128)}', space=vmem, size = 0x2000, scoped, tag = 'scratch operand']
  %s0 = inlined_call_operand.vmem [shape: f32[16,32], index: 0, kind: input, shape index: {}]
  %s1 = inlined_call_operand.vmem [shape: f32[32,4], index: 1, kind: input, shape index: {}]
  %s2 = inlined_call_operand.vmem [shape: f32[4,128], index: 2, kind: input, shape index: {}]
  %s3 = inlined_call_operand.hbm [shape: f32[16,128], index: 3, kind: output, shape index: {}]
  %s4 = sld [smem:[#allocation0]]
  $region26: #{tpu_custom_call.1} parent=0
    _
  %s6 = ssub.s32 1, %s4
  %s7 = scalar_select 0, %s6, %s4
  $region1: #{tpu_custom_call.1} parent=0
    #allocation3 [shape = 'u8[8192]{0}', space=vmem, size = 0x2000, scoped, tag = 'output window, operand 0, single buffered']
    #allocation4 [shape = 's32[1]{0}', space=sflag, size = 0x4, scoped, tag = 'scoped memory for tpu_custom_call.1']
    %8 = vsyncpa [#allocation4], 0
    // Predicated region
    $region2: #{tpu_custom_call.1} parent=1 // pred_check
      _
    $region3: #{tpu_custom_call.1} parent=1 // pred_check_branch
      %10 = sbr.rel (0) target = $region5
    $region4: #{tpu_custom_call.1} parent=1 // pred_region
      _
    $region5: #{tpu_custom_call.1} parent=1 // pred_fallthru
      _
    // Predicated region
    $region6: #{tpu_custom_call.1} parent=1 // pred_check
      _
    $region7: #{tpu_custom_call.1} parent=1 // pred_check_branch
      %12 = sbr.rel (0) target = $region9
    $region8: #{tpu_custom_call.1} parent=1 // pred_region
      _
    $region9: #{tpu_custom_call.1} parent=1 // pred_fallthru
      _
    // Predicated region
    $region10: #{tpu_custom_call.1} parent=1 // pred_check
      _
    $region11: #{tpu_custom_call.1} parent=1 // pred_check_branch
      %14 = sbr.rel (0) target = $region13
    $region12: #{tpu_custom_call.1} parent=1 // pred_region
      _
    $region13: #{tpu_custom_call.1} parent=1 // pred_fallthru
      _
    %p15 = scmp.eq.s32.totalorder 0, 0
    // Predicated region
    $region14: #{tpu_custom_call.1} parent=1 // pred_check
      %p16 = pneg %p15
    $region15: #{tpu_custom_call.1} parent=1 // pred_check_branch
      %18 = sbr.rel (%p16) target = $region17
    $region16: #{tpu_custom_call.1} parent=1 // pred_region
      %v19 = vld [vmem:[%s0] sm:$0xff]
      %v20 = vld [vmem:[%s0 + $0x8] sm:$0xff]
      %v21 = vld [vmem:[%s1] sm:$0xff]
      %v22 = vld [vmem:[%s1 + $0x8] sm:$0xff]
      %v23 = vld [vmem:[%s1 + $0x10] sm:$0xff]
      %v24 = vld [vmem:[%s1 + $0x18] sm:$0xff]
      %vm25 = vcmask 261120
      %v27 = vsel %vm25, %v19, 0
      %v30 = vsel %vm25, %v20, 0
      %32 = vmatprep.subr.mxu0 0.0
      %33 = vmatpush1.msra.mxu0 %v21
      %34 = vmatprep.subr.mxu0 0.0
      %35 = vmatpush1.msra.mxu0 %v22
      %36 = vmatprep.subr.mxu0 0.0
      %37 = vmatpush1.msra.mxu0 %v23
      %38 = vmatprep.subr.mxu0 0.0
      %39 = vmatpush1.msra.mxu0 %v24
      %40 = vmatprep.subr.mxu0 0.0
      %41 = vmatpush1.msra.mxu0 0.0
      %42 = vmatprep.subr.mxu0 0.0
      %43 = vmatpush1.msra.mxu0 0.0
      %44 = vmatprep.subr.mxu0 0.0
      %45 = vmatpush1.msra.mxu0 0.0
      %46 = vmatprep.subr.mxu0 0.0
      %47 = vmatpush1.msra.mxu0 0.0
      %48 = vmatprep.subr.mxu0 0.0
      %49 = vmatpush1.msra.mxu0 0.0
      %50 = vmatprep.subr.mxu0 0.0
      %51 = vmatpush1.msra.mxu0 0.0
      %52 = vmatprep.subr.mxu0 0.0
      %53 = vmatpush1.msra.mxu0 0.0
      %54 = vmatprep.subr.mxu0 0.0
      %55 = vmatpush1.msra.mxu0 0.0
      %56 = vmatprep.subr.mxu0 0.0
      %57 = vmatpush1.msra.mxu0 0.0
      %58 = vmatprep.subr.mxu0 0.0
      %59 = vmatpush1.msra.mxu0 0.0
      %60 = vmatprep.subr.mxu0 0.0
      %61 = vmatpush1.msra.mxu0 0.0
      %62 = vmatprep.subr.mxu0 0.0
      %63 = vmatpush1.msra.mxu0 0.0
      %64 = vmatprep.subr.mxu0 0.0
      %65 = vmatpush1.msra.mxu0 0.0
      %66 = vmatprep.subr.mxu0 0.0
      %67 = vmatpush1.msra.mxu0 0.0
      %68 = vmatprep.subr.mxu0 0.0
      %69 = vmatpush1.msra.mxu0 0.0
      %70 = vmatprep.subr.mxu0 0.0
      %71 = vmatpush1.msra.mxu0 0.0
      %72 = vmatprep.subr.mxu0 0.0
      %73 = vmatpush1.msra.mxu0 0.0
      %74 = vmatprep.subr.mxu0 0.0
      %75 = vmatpush1.msra.mxu0 0.0
      %76 = vmatprep.subr.mxu0 0.0
      %77 = vmatpush1.msra.mxu0 0.0
      %78 = vmatprep.subr.mxu0 0.0
      %79 = vmatpush1.msra.mxu0 0.0
      %80 = vmatprep.subr.mxu0 0.0
      %81 = vmatpush1.msra.mxu0 0.0
      %82 = vmatprep.subr.mxu0 0.0
      %83 = vmatpush1.msra.mxu0 0.0
      %84 = vmatprep.subr.mxu0 0.0
      %85 = vmatpush1.msra.mxu0 0.0
      %86 = vmatprep.subr.mxu0 0.0
      %87 = vmatpush1.msra.mxu0 0.0
      %88 = vmatprep.subr.mxu0 0.0
      %89 = vmatpush1.msra.mxu0 0.0
      %90 = vmatprep.subr.mxu0 0.0
      %91 = vmatpush1.msra.mxu0 0.0
      %92 = vmatprep.subr.mxu0 0.0
      %93 = vmatpush1.msra.mxu0 0.0
      %94 = vmatprep.subr.mxu0 0.0
      %95 = vmatpush1.msra.mxu0 0.0
      %96 = vmatprep.mubr.f32.mxu0 0.0
      %97 = vmatmul.mubr.f32.gmra.mrb[0].mxu0 %v27
      %v98 = vpop.f32.mrb[0].mxu0
      %v99 = vadd.f32 0.0, %v98
      %v100 = vpop.f32.mrb[0].mxu0
      %101 = vmatprep.mubr.f32.mxu0 0.0
      %102 = vmatmul.mubr.f32.gmra.mrb[0].mxu0 %v30
      %v103 = vpop.f32.mrb[0].mxu0
      %v104 = vadd.f32 0.0, %v103
      %v105 = vpop.f32.mrb[0].mxu0
      %106 = vdwg.mxu0
      %vm107 = vcmask 31744
      %108 = vst.msk [vmem:[#allocation2] sm:$0xff] %vm107, %v99
      %109 = vst.msk [vmem:[#allocation2 + $0x8] sm:$0xff] %vm107, %v104
    $region17: #{tpu_custom_call.1} parent=1 // pred_fallthru
      _
    %v110 = vld [vmem:[#allocation2] sm:$0xff]
    %v111 = vld [vmem:[#allocation2 + $0x8] sm:$0xff]
    %v112 = vld [vmem:[%s2] sm:$0xf]
    %vm113 = vcmask 31744
    %v115 = vsel %vm113, %v110, 0
    %v118 = vsel %vm113, %v111, 0
    %vm120 = vcmask 1043456
    %v122 = vsel %vm120, %v112, 0
    %124 = vmatprep.subr.mxu0 0.0
    %125 = vmatpush1.msra.mxu0 %v122
    %126 = vmatprep.subr.mxu0 0.0
    %127 = vmatpush1.msra.mxu0 0.0
    %128 = vmatprep.subr.mxu0 0.0
    %129 = vmatpush1.msra.mxu0 0.0
    %130 = vmatprep.subr.mxu0 0.0
    %131 = vmatpush1.msra.mxu0 0.0
    %132 = vmatprep.subr.mxu0 0.0
    %133 = vmatpush1.msra.mxu0 0.0
    %134 = vmatprep.subr.mxu0 0.0
    %135 = vmatpush1.msra.mxu0 0.0
    %136 = vmatprep.subr.mxu0 0.0
    %137 = vmatpush1.msra.mxu0 0.0
    %138 = vmatprep.subr.mxu0 0.0
    %139 = vmatpush1.msra.mxu0 0.0
    %140 = vmatprep.subr.mxu0 0.0
    %141 = vmatpush1.msra.mxu0 0.0
    %142 = vmatprep.subr.mxu0 0.0
    %143 = vmatpush1.msra.mxu0 0.0
    %144 = vmatprep.subr.mxu0 0.0
    %145 = vmatpush1.msra.mxu0 0.0
    %146 = vmatprep.subr.mxu0 0.0
    %147 = vmatpush1.msra.mxu0 0.0
    %148 = vmatprep.subr.mxu0 0.0
    %149 = vmatpush1.msra.mxu0 0.0
    %150 = vmatprep.subr.mxu0 0.0
    %151 = vmatpush1.msra.mxu0 0.0
    %152 = vmatprep.subr.mxu0 0.0
    %153 = vmatpush1.msra.mxu0 0.0
    %154 = vmatprep.subr.mxu0 0.0
    %155 = vmatpush1.msra.mxu0 0.0
    %156 = vmatprep.subr.mxu0 0.0
    %157 = vmatpush1.msra.mxu0 0.0
    %158 = vmatprep.subr.mxu0 0.0
    %159 = vmatpush1.msra.mxu0 0.0
    %160 = vmatprep.subr.mxu0 0.0
    %161 = vmatpush1.msra.mxu0 0.0
    %162 = vmatprep.subr.mxu0 0.0
    %163 = vmatpush1.msra.mxu0 0.0
    %164 = vmatprep.subr.mxu0 0.0
    %165 = vmatpush1.msra.mxu0 0.0
    %166 = vmatprep.subr.mxu0 0.0
    %167 = vmatpush1.msra.mxu0 0.0
    %168 = vmatprep.subr.mxu0 0.0
    %169 = vmatpush1.msra.mxu0 0.0
    %170 = vmatprep.subr.mxu0 0.0
    %171 = vmatpush1.msra.mxu0 0.0
    %172 = vmatprep.subr.mxu0 0.0
    %173 = vmatpush1.msra.mxu0 0.0
    %174 = vmatprep.subr.mxu0 0.0
    %175 = vmatpush1.msra.mxu0 0.0
    %176 = vmatprep.subr.mxu0 0.0
    %177 = vmatpush1.msra.mxu0 0.0
    %178 = vmatprep.subr.mxu0 0.0
    %179 = vmatpush1.msra.mxu0 0.0
    %180 = vmatprep.subr.mxu0 0.0
    %181 = vmatpush1.msra.mxu0 0.0
    %182 = vmatprep.subr.mxu0 0.0
    %183 = vmatpush1.msra.mxu0 0.0
    %184 = vmatprep.subr.mxu0 0.0
    %185 = vmatpush1.msra.mxu0 0.0
    %186 = vmatprep.subr.mxu0 0.0
    %187 = vmatpush1.msra.mxu0 0.0
    %188 = vmatprep.mubr.f32.mxu0 0.0
    %189 = vmatmul.mubr.f32.gmra.mrb[0].mxu0 %v115
    %v190 = vpop.f32.mrb[0].mxu0
    %v191 = vadd.f32 0.0, %v190
    %v192 = vpop.f32.mrb[0].mxu0
    %193 = vmatprep.mubr.f32.mxu0 0.0
    %194 = vmatmul.mubr.f32.gmra.mrb[0].mxu0 %v118
    %v195 = vpop.f32.mrb[0].mxu0
    %v196 = vadd.f32 0.0, %v195
    %v197 = vpop.f32.mrb[0].mxu0
    %198 = vdwg.mxu0
    %199 = vst [vmem:[#allocation3] sm:$0xff] %v191
    %200 = vst [vmem:[#allocation3 + $0x8] sm:$0xff] %v196
    // Predicated region
    $region18: #{tpu_custom_call.1} parent=1 // pred_check
      _
    $region19: #{tpu_custom_call.1} parent=1 // pred_check_branch
      %202 = sbr.rel (0) target = $region21
    $region20: #{tpu_custom_call.1} parent=1 // pred_region
      %s204 = ssub.s32 256, 256
      %205 = vsyncadd [#allocation4], %s204
      %s206 = sshll.u32 [#allocation3], 4
      %s207 = int_to_ptr.vmem [resolvable:$true] %s206
      %212 = dma.vmem_to_hbm [thread:$0]  %s207, 256, %s3, [#allocation4], 128, 128, 8
    $region21: #{tpu_custom_call.1} parent=1 // pred_fallthru
      _
    // Predicated region
    $region22: #{tpu_custom_call.1} parent=1 // pred_check
      _
    $region23: #{tpu_custom_call.1} parent=1 // pred_check_branch
      %214 = sbr.rel (0) target = $region25
    $region24: #{tpu_custom_call.1} parent=1 // pred_region
      %215 = dma.done [#allocation4], 256
    $region25: #{tpu_custom_call.1} parent=1 // pred_fallthru
      _
    %216 = vsyncpa [#allocation4], 1

</llo_original>
